<compile_context>
chip_gen: v6e
topology: v6e:2x2x1
jax: 0.10.0
libtpu: 0.0.40
codegen_flags: <defaults>
</compile_context>

<pallas_src>
import functools

import jax
import jax.numpy as jnp
from jax.experimental import pallas as pl
from jax.experimental.pallas import tpu as pltpu

ACTION_SIZE = 20
IN_FEATURES = 128
OUT_FEATURES = 18
COMBO_FEATURES = IN_FEATURES + ACTION_SIZE      # 148

# Lane-aligned (padded) dims used inside the kernel.
D_H1 = 128       # linear1 width (already lane aligned)
D_COMBO = 256    # combo features padded 148 -> 256 (kernel order: [h1 | action | 0])

_MEGACORE_MIN_BATCH = 256   # force grid >= 2 above this so both v7x TCs get work


def _round_up(x, m):
    return (x + m - 1) // m * m


def _choose_tile(batch, block_b, mult):
    """Pick the batch tile: big tiles, modest padding waste, grid>=2 for large B."""
    n_blocks = -(-batch // block_b)
    if batch >= _MEGACORE_MIN_BATCH:
        n_blocks = max(n_blocks, 2)
    if n_blocks == 1:
        # Single block spanning the whole batch (block dim == full dim is always legal).
        return batch
    tb = _round_up(-(-batch // n_blocks), mult)
    return min(tb, _round_up(block_b, mult))


def critic_kernel(state_ref, action_ref,
                  w1_ref, b1_ref,
                  w2_ref, b2_ref,
                  w3_ref, b3_ref,
                  w4_ref, b4_ref,
                  out_ref, combo_ref):
    mm_dtype = w1_ref.dtype            # matmul input dtype (bf16 fast path or f32)
    tb = state_ref.shape[0]

    # linear1 + ReLU (f32 accumulate / elementwise); inputs cast to the MXU dtype here,
    # so the wrapper never makes padded/cast HBM copies of the inputs.
    state = state_ref[...].astype(mm_dtype)                      # (tb, 128)
    h1 = jnp.dot(state, w1_ref[...], preferred_element_type=jnp.float32) + b1_ref[...]
    h1 = jnp.maximum(h1, 0.0)

    # Assemble cat(action, h1) in a VMEM scratch, reordered as [h1 | action | zeros] so
    # every placement is lane-aligned (w2 rows are reordered to match in prepare_params).
    combo_ref[:, :D_H1] = h1
    combo_ref[:, D_H1:] = jnp.zeros((tb, D_COMBO - D_H1), jnp.float32)
    combo_ref[:, D_H1:D_H1 + ACTION_SIZE] = action_ref[...].astype(jnp.float32)

    # linear2 + ReLU: one K=256 lane-aligned matmul (padded lanes stay exactly zero).
    combo = combo_ref[...].astype(mm_dtype)                      # (tb, 256)
    h2 = jnp.dot(combo, w2_ref[...], preferred_element_type=jnp.float32) + b2_ref[...]
    h2 = jnp.maximum(h2, 0.0)

    # linear3 + ReLU.
    h3 = jnp.dot(h2.astype(mm_dtype), w3_ref[...],
                 preferred_element_type=jnp.float32) + b3_ref[...]
    h3 = jnp.maximum(h3, 0.0)

    # Output layer: real 18-wide block stored directly (store volume is tiny).
    out_ref[...] = (jnp.dot(h3.astype(mm_dtype), w4_ref[...],
                            preferred_element_type=jnp.float32) + b4_ref[...])


def prepare_params(params, matmul_dtype=jnp.bfloat16):
    """One-time conversion of torch-style (out, in) weights into padded kernel slabs."""
    (w1, b1, w2, b2, w3, b3, w4, b4) = params

    def pad_to(a, shape):
        return jnp.pad(a, [(0, t - s) for s, t in zip(a.shape, shape)])

    w1p = w1.T.astype(matmul_dtype)                                        # (128, 128)

    # Reference input order is cat(action, h1); the kernel builds [h1 | action | 0],
    # so reorder w2^T rows to [h1 rows (20:148) ; action rows (0:20)] then zero-pad.
    w2_t = w2.T                                                            # (148, 148)
    w2_reordered = jnp.concatenate([w2_t[ACTION_SIZE:, :], w2_t[:ACTION_SIZE, :]], axis=0)
    w2p = pad_to(w2_reordered, (D_COMBO, D_COMBO)).astype(matmul_dtype)    # (256, 256)
    w3p = pad_to(w3.T, (D_COMBO, D_COMBO)).astype(matmul_dtype)            # (256, 256)
    w4p = pad_to(w4.T, (D_COMBO, OUT_FEATURES)).astype(matmul_dtype)       # (256, 18)

    # Biases stay f32 (added post-accumulation); kept 2-D for the kernel.
    b1p = b1[None, :].astype(jnp.float32)                                  # (1, 128)
    b2p = pad_to(b2[None, :], (1, D_COMBO)).astype(jnp.float32)            # (1, 256)
    b3p = pad_to(b3[None, :], (1, D_COMBO)).astype(jnp.float32)            # (1, 256)
    b4p = b4[None, :].astype(jnp.float32)                                  # (1, 18)

    return (w1p, b1p, w2p, b2p, w3p, b3p, w4p, b4p)


@functools.partial(jax.jit, static_argnames=("block_b",))
def critic_forward(state, action, prepped, block_b=1024):
    """state: (B, 128) f32, action: (B, 20) f32, prepped: output of prepare_params."""
    (w1p, b1p, w2p, b2p, w3p, b3p, w4p, b4p) = prepped
    mm_dtype = w1p.dtype
    B = state.shape[0]

    # bf16 native tiling is (16,128): use 32-row multiples for bf16, 8 for f32.
    mult = 32 if mm_dtype == jnp.bfloat16 else 8
    tb = _choose_tile(B, block_b, mult)
    grid = -(-B // tb)

    def batch_spec(width):
        return pl.BlockSpec((tb, width), lambda i: (i, 0))

    def full_spec(shape):
        return pl.BlockSpec(shape, lambda i: (0, 0))

    out = pl.pallas_call(
        critic_kernel,
        out_shape=jax.ShapeDtypeStruct((B, OUT_FEATURES), jnp.float32),
        grid=(grid,),
        in_specs=[
            batch_spec(IN_FEATURES),        # state tile (tb, 128), fed unpadded
            batch_spec(ACTION_SIZE),        # action tile (tb, 20), natural width
            full_spec(w1p.shape), full_spec(b1p.shape),
            full_spec(w2p.shape), full_spec(b2p.shape),
            full_spec(w3p.shape), full_spec(b3p.shape),
            full_spec(w4p.shape), full_spec(b4p.shape),
        ],
        out_specs=batch_spec(OUT_FEATURES),  # real 18-wide output, no wrapper slice
        scratch_shapes=[pltpu.VMEM((tb, D_COMBO), jnp.float32)],
        compiler_params=pltpu.CompilerParams(
            dimension_semantics=("parallel",)),
    )(state, action, w1p, b1p, w2p, b2p, w3p, b3p, w4p, b4p)

    return out


def init_params(key):
    """Deterministic init mimicking nn.Linear defaults (uniform +-1/sqrt(fan_in))."""
    def linear(key, fan_in, fan_out):
        kw, kb = jax.random.split(key)
        bound = 1.0 / float(fan_in) ** 0.5
        w = jax.random.uniform(kw, (fan_out, fan_in), jnp.float32, -bound, bound)
        b = jax.random.uniform(kb, (fan_out,), jnp.float32, -bound, bound)
        return w, b

    k1, k2, k3, k4 = jax.random.split(key, 4)
    w1, b1 = linear(k1, IN_FEATURES, IN_FEATURES)
    w2, b2 = linear(k2, COMBO_FEATURES, COMBO_FEATURES)
    w3, b3 = linear(k3, COMBO_FEATURES, COMBO_FEATURES)
    w4, b4 = linear(k4, COMBO_FEATURES, OUT_FEATURES)
    return (w1, b1, w2, b2, w3, b3, w4, b4)


def critic_reference(state, action, params):
    """Pure-JAX reference matching the PyTorch forward exactly."""
    (w1, b1, w2, b2, w3, b3, w4, b4) = params
    h1 = jax.nn.relu(state @ w1.T + b1)
    combo = jnp.concatenate((action, h1), axis=1)
    h2 = jax.nn.relu(combo @ w2.T + b2)
    h3 = jax.nn.relu(h2 @ w3.T + b3)
    return h3 @ w4.T + b4


if __name__ == "__main__":
    key = jax.random.PRNGKey(0)
    k_state, k_action, k_params = jax.random.split(key, 3)
    params = init_params(k_params)

    # Small-shape test (B=4): single full-extent batch block.
    B = 4
    state = jax.random.normal(k_state, (B, IN_FEATURES), jnp.float32)
    action = jax.random.normal(k_action, (B, ACTION_SIZE), jnp.float32)
    ref = critic_reference(state, action, params)

    # f32 matmul path: tight match vs reference.
    prepped_f32 = prepare_params(params, jnp.float32)
    out = jax.block_until_ready(critic_forward(state, action, prepped_f32))
    assert out.shape == (B, OUT_FEATURES), out.shape
    assert jnp.allclose(out, ref, atol=1e-4, rtol=1e-4), "f32 mismatch vs reference"

    # Default bf16 matmul inputs / f32 accumulation (MXU fast path); looser tolerance.
    prepped_bf16 = prepare_params(params)
    out_bf16 = jax.block_until_ready(critic_forward(state, action, prepped_bf16))
    assert out_bf16.shape == (B, OUT_FEATURES), out_bf16.shape
    assert jnp.allclose(out_bf16, ref, atol=1e-1, rtol=1e-1), "bf16 mismatch vs reference"

    # Larger batch exercising grid >= 2 (megacore split) and the masked partial last
    # block (rows >= B are never written).
    B2 = 300
    state2 = jax.random.normal(k_state, (B2, IN_FEATURES), jnp.float32)
    action2 = jax.random.normal(k_action, (B2, ACTION_SIZE), jnp.float32)
    ref2 = critic_reference(state2, action2, params)
    out2 = jax.block_until_ready(critic_forward(state2, action2, prepped_f32))
    assert out2.shape == (B2, OUT_FEATURES), out2.shape
    assert jnp.allclose(out2, ref2, atol=1e-4, rtol=1e-4), "f32 multi-block mismatch"

    print("KERNEL_OK")
</pallas_src>

<mosaic_0001>
module attributes {stable_mosaic.version = 11 : i64} {
  func.func @critic_kernel(%arg0: i32, %arg1: memref<4x128xf32, #tpu.memory_space<vmem>>, %arg2: memref<4x20xf32, #tpu.memory_space<vmem>>, %arg3: memref<128x128xf32, #tpu.memory_space<vmem>>, %arg4: memref<1x128xf32, #tpu.memory_space<vmem>>, %arg5: memref<256x256xf32, #tpu.memory_space<vmem>>, %arg6: memref<1x256xf32, #tpu.memory_space<vmem>>, %arg7: memref<256x256xf32, #tpu.memory_space<vmem>>, %arg8: memref<1x256xf32, #tpu.memory_space<vmem>>, %arg9: memref<256x18xf32, #tpu.memory_space<vmem>>, %arg10: memref<1x18xf32, #tpu.memory_space<vmem>>, %arg11: memref<4x18xf32, #tpu.memory_space<vmem>>, %arg12: memref<4x256xf32, #tpu.memory_space<vmem>>) attributes {dimension_semantics = [#tpu.dimension_semantics<parallel>], iteration_bounds = array<i64: 1>, scalar_prefetch = 0 : i64, scratch_operands = 1 : i64, tpu.core_type = #tpu.core_type<tc>, window_params = [{transform_indices = @transform_0, window_bounds = array<i64: 4, 128>}, {transform_indices = @transform_1, window_bounds = array<i64: 4, 20>}, {pipeline_mode = #tpu.pipeline_mode<synchronous>, transform_indices = @transform_2, window_bounds = array<i64: 128, 128>}, {pipeline_mode = #tpu.pipeline_mode<synchronous>, transform_indices = @transform_3, window_bounds = array<i64: 1, 128>}, {pipeline_mode = #tpu.pipeline_mode<synchronous>, transform_indices = @transform_4, window_bounds = array<i64: 256, 256>}, {pipeline_mode = #tpu.pipeline_mode<synchronous>, transform_indices = @transform_5, window_bounds = array<i64: 1, 256>}, {pipeline_mode = #tpu.pipeline_mode<synchronous>, transform_indices = @transform_6, window_bounds = array<i64: 256, 256>}, {pipeline_mode = #tpu.pipeline_mode<synchronous>, transform_indices = @transform_7, window_bounds = array<i64: 1, 256>}, {pipeline_mode = #tpu.pipeline_mode<synchronous>, transform_indices = @transform_8, window_bounds = array<i64: 256, 18>}, {pipeline_mode = #tpu.pipeline_mode<synchronous>, transform_indices = @transform_9, window_bounds = array<i64: 1, 18>}, {transform_indices = @transform_10, window_bounds = array<i64: 4, 18>}]} {
    %c0 = arith.constant 0 : index
    %c0_0 = arith.constant 0 : index
    %0 = vector.load %arg1[%c0, %c0_0] : memref<4x128xf32, #tpu.memory_space<vmem>>, vector<4x128xf32>
    %c0_1 = arith.constant 0 : index
    %c0_2 = arith.constant 0 : index
    %1 = vector.load %arg3[%c0_1, %c0_2] : memref<128x128xf32, #tpu.memory_space<vmem>>, vector<128x128xf32>
    %cst = arith.constant dense<0.000000e+00> : vector<4x128xf32>
    %2 = tpu.matmul %0, %1, %cst {dimension_numbers = #tpu.dot_dimension_numbers<[1], [0], [0], [1], [0, 0, 1, 1], [], []>} : vector<4x128xf32>, vector<128x128xf32>, vector<4x128xf32> -> vector<4x128xf32>
    %c0_3 = arith.constant 0 : index
    %c0_4 = arith.constant 0 : index
    %3 = vector.load %arg4[%c0_3, %c0_4] : memref<1x128xf32, #tpu.memory_space<vmem>>, vector<1x128xf32>
    %4 = vector.broadcast %3 : vector<1x128xf32> to vector<4x128xf32>
    %5 = arith.addf %2, %4 : vector<4x128xf32>
    %cst_5 = arith.constant 0.000000e+00 : f32
    %6 = vector.broadcast %cst_5 : f32 to vector<4x128xf32>
    %7 = arith.maximumf %5, %6 : vector<4x128xf32>
    %c0_6 = arith.constant 0 : index
    %c0_7 = arith.constant 0 : index
    %8 = vector.load %arg12[%c0_6, %c0_7] : memref<4x256xf32, #tpu.memory_space<vmem>>, vector<4x128xf32>
    tpu.vector_store %arg12[%c0_6, %c0_7], %7 {strides = array<i32>} : memref<4x256xf32, #tpu.memory_space<vmem>>, vector<4x128xf32>,
    %cst_8 = arith.constant 0.000000e+00 : f32
    %9 = vector.broadcast %cst_8 : f32 to vector<4x128xf32>
    %c0_9 = arith.constant 0 : index
    %c128 = arith.constant 128 : index
    %10 = vector.load %arg12[%c0_9, %c128] : memref<4x256xf32, #tpu.memory_space<vmem>>, vector<4x128xf32>
    tpu.vector_store %arg12[%c0_9, %c128], %9 {strides = array<i32>} : memref<4x256xf32, #tpu.memory_space<vmem>>, vector<4x128xf32>,
    %c0_10 = arith.constant 0 : index
    %c0_11 = arith.constant 0 : index
    %11 = vector.load %arg2[%c0_10, %c0_11] : memref<4x20xf32, #tpu.memory_space<vmem>>, vector<4x20xf32>
    %c0_12 = arith.constant 0 : index
    %c128_13 = arith.constant 128 : index
    %12 = vector.load %arg12[%c0_12, %c128_13] : memref<4x256xf32, #tpu.memory_space<vmem>>, vector<4x20xf32>
    tpu.vector_store %arg12[%c0_12, %c128_13], %11 {strides = array<i32>} : memref<4x256xf32, #tpu.memory_space<vmem>>, vector<4x20xf32>,
    %c0_14 = arith.constant 0 : index
    %c0_15 = arith.constant 0 : index
    %13 = vector.load %arg12[%c0_14, %c0_15] : memref<4x256xf32, #tpu.memory_space<vmem>>, vector<4x256xf32>
    %c0_16 = arith.constant 0 : index
    %c0_17 = arith.constant 0 : index
    %14 = vector.load %arg5[%c0_16, %c0_17] : memref<256x256xf32, #tpu.memory_space<vmem>>, vector<256x256xf32>
    %cst_18 = arith.constant dense<0.000000e+00> : vector<4x256xf32>
    %15 = tpu.matmul %13, %14, %cst_18 {dimension_numbers = #tpu.dot_dimension_numbers<[1], [0], [0], [1], [0, 0, 1, 1], [], []>} : vector<4x256xf32>, vector<256x256xf32>, vector<4x256xf32> -> vector<4x256xf32>
    %c0_19 = arith.constant 0 : index
    %c0_20 = arith.constant 0 : index
    %16 = vector.load %arg6[%c0_19, %c0_20] : memref<1x256xf32, #tpu.memory_space<vmem>>, vector<1x256xf32>
    %17 = vector.broadcast %16 : vector<1x256xf32> to vector<4x256xf32>
    %18 = arith.addf %15, %17 : vector<4x256xf32>
    %cst_21 = arith.constant 0.000000e+00 : f32
    %19 = vector.broadcast %cst_21 : f32 to vector<4x256xf32>
    %20 = arith.maximumf %18, %19 : vector<4x256xf32>
    %c0_22 = arith.constant 0 : index
    %c0_23 = arith.constant 0 : index
    %21 = vector.load %arg7[%c0_22, %c0_23] : memref<256x256xf32, #tpu.memory_space<vmem>>, vector<256x256xf32>
    %cst_24 = arith.constant dense<0.000000e+00> : vector<4x256xf32>
    %22 = tpu.matmul %20, %21, %cst_24 {dimension_numbers = #tpu.dot_dimension_numbers<[1], [0], [0], [1], [0, 0, 1, 1], [], []>} : vector<4x256xf32>, vector<256x256xf32>, vector<4x256xf32> -> vector<4x256xf32>
    %c0_25 = arith.constant 0 : index
    %c0_26 = arith.constant 0 : index
    %23 = vector.load %arg8[%c0_25, %c0_26] : memref<1x256xf32, #tpu.memory_space<vmem>>, vector<1x256xf32>
    %24 = vector.broadcast %23 : vector<1x256xf32> to vector<4x256xf32>
    %25 = arith.addf %22, %24 : vector<4x256xf32>
    %cst_27 = arith.constant 0.000000e+00 : f32
    %26 = vector.broadcast %cst_27 : f32 to vector<4x256xf32>
    %27 = arith.maximumf %25, %26 : vector<4x256xf32>
    %c0_28 = arith.constant 0 : index
    %c0_29 = arith.constant 0 : index
    %28 = vector.load %arg9[%c0_28, %c0_29] : memref<256x18xf32, #tpu.memory_space<vmem>>, vector<256x18xf32>
    %cst_30 = arith.constant dense<0.000000e+00> : vector<4x18xf32>
    %29 = tpu.matmul %27, %28, %cst_30 {dimension_numbers = #tpu.dot_dimension_numbers<[1], [0], [0], [1], [0, 0, 1, 1], [], []>} : vector<4x256xf32>, vector<256x18xf32>, vector<4x18xf32> -> vector<4x18xf32>
    %c0_31 = arith.constant 0 : index
    %c0_32 = arith.constant 0 : index
    %30 = vector.load %arg10[%c0_31, %c0_32] : memref<1x18xf32, #tpu.memory_space<vmem>>, vector<1x18xf32>
    %31 = vector.broadcast %30 : vector<1x18xf32> to vector<4x18xf32>
    %32 = arith.addf %29, %31 : vector<4x18xf32>
    %c0_33 = arith.constant 0 : index
    %c0_34 = arith.constant 0 : index
    %33 = vector.load %arg11[%c0_33, %c0_34] : memref<4x18xf32, #tpu.memory_space<vmem>>, vector<4x18xf32>
    tpu.vector_store %arg11[%c0_33, %c0_34], %32 {strides = array<i32>} : memref<4x18xf32, #tpu.memory_space<vmem>>, vector<4x18xf32>,
    return
  }
  func.func @transform_0(%arg0: i32) -> (i32, i32) {
    %c0_i32 = arith.constant 0 : i32
    %c0_i32_0 = arith.constant 0 : i32
    return %arg0, %c0_i32 : i32, i32
  }
  func.func @transform_1(%arg0: i32) -> (i32, i32) {
    %c0_i32 = arith.constant 0 : i32
    %c0_i32_0 = arith.constant 0 : i32
    return %arg0, %c0_i32 : i32, i32
  }
  func.func @transform_2(%arg0: i32) -> (i32, i32) {
    %c0_i32 = arith.constant 0 : i32
    %c0_i32_0 = arith.constant 0 : i32
    %c0_i32_1 = arith.constant 0 : i32
    return %c0_i32, %c0_i32_0 : i32, i32
  }
  func.func @transform_3(%arg0: i32) -> (i32, i32) {
    %c0_i32 = arith.constant 0 : i32
    %c0_i32_0 = arith.constant 0 : i32
    %c0_i32_1 = arith.constant 0 : i32
    return %c0_i32, %c0_i32_0 : i32, i32
  }
  func.func @transform_4(%arg0: i32) -> (i32, i32) {
    %c0_i32 = arith.constant 0 : i32
    %c0_i32_0 = arith.constant 0 : i32
    %c0_i32_1 = arith.constant 0 : i32
    return %c0_i32, %c0_i32_0 : i32, i32
  }
  func.func @transform_5(%arg0: i32) -> (i32, i32) {
    %c0_i32 = arith.constant 0 : i32
    %c0_i32_0 = arith.constant 0 : i32
    %c0_i32_1 = arith.constant 0 : i32
    return %c0_i32, %c0_i32_0 : i32, i32
  }
  func.func @transform_6(%arg0: i32) -> (i32, i32) {
    %c0_i32 = arith.constant 0 : i32
    %c0_i32_0 = arith.constant 0 : i32
    %c0_i32_1 = arith.constant 0 : i32
    return %c0_i32, %c0_i32_0 : i32, i32
  }
  func.func @transform_7(%arg0: i32) -> (i32, i32) {
    %c0_i32 = arith.constant 0 : i32
    %c0_i32_0 = arith.constant 0 : i32
    %c0_i32_1 = arith.constant 0 : i32
    return %c0_i32, %c0_i32_0 : i32, i32
  }
  func.func @transform_8(%arg0: i32) -> (i32, i32) {
    %c0_i32 = arith.constant 0 : i32
    %c0_i32_0 = arith.constant 0 : i32
    %c0_i32_1 = arith.constant 0 : i32
    return %c0_i32, %c0_i32_0 : i32, i32
  }
  func.func @transform_9(%arg0: i32) -> (i32, i32) {
    %c0_i32 = arith.constant 0 : i32
    %c0_i32_0 = arith.constant 0 : i32
    %c0_i32_1 = arith.constant 0 : i32
    return %c0_i32, %c0_i32_0 : i32, i32
  }
  func.func @transform_10(%arg0: i32) -> (i32, i32) {
    %c0_i32 = arith.constant 0 : i32
    %c0_i32_0 = arith.constant 0 : i32
    return %arg0, %c0_i32 : i32, i32
  }
}

</mosaic_0001>

<llo_original>
// kernel: critic_forward.1
$region0: #{critic_forward.1}
  #allocation0 [shape = 'u32[]', space=smem, size = 0x4, offset = 0x4, fixed_abs, tag = 'smem constant byte address 0x4 - core index']
  #allocation1 [shape = 'u32[144,128]{1,0:T(1,128)}', space=vmem, size = 0x12000, scoped, tag = 'internal scratch']
  #allocation2 [shape = 'f32[4,256]{1,0:T(4,128)}', space=vmem, size = 0x1000, scoped, tag = 'scratch operand']
  %s0 = inlined_call_operand.vmem [shape: f32[4,128], index: 0, kind: input, shape index: {}]
  %s1 = inlined_call_operand.vmem [shape: f32[4,20], index: 1, kind: input, shape index: {}]
  %s2 = inlined_call_operand.vmem [shape: f32[128,128], index: 2, kind: input, shape index: {}]
  %s3 = inlined_call_operand.vmem [shape: f32[1,128], index: 3, kind: input, shape index: {}]
  %s4 = inlined_call_operand.hbm [shape: f32[256,256], index: 4, kind: input, shape index: {}]
  %s5 = inlined_call_operand.vmem [shape: f32[1,256], index: 5, kind: input, shape index: {}]
  %s6 = inlined_call_operand.hbm [shape: f32[256,256], index: 6, kind: input, shape index: {}]
  %s7 = inlined_call_operand.vmem [shape: f32[1,256], index: 7, kind: input, shape index: {}]
  %s8 = inlined_call_operand.vmem [shape: f32[256,18], index: 8, kind: input, shape index: {}]
  %s9 = inlined_call_operand.vmem [shape: f32[1,18], index: 9, kind: input, shape index: {}]
  %s10 = inlined_call_operand.hbm [shape: f32[4,18], index: 10, kind: output, shape index: {}]
  %s11 = sld [smem:[#allocation0]]
  $region58: #{critic_forward.1} parent=0
    _
  %s13 = ssub.s32 1, %s11
  %s14 = scalar_select 0, %s13, %s11
  $region1: #{critic_forward.1} parent=0
    #allocation3 [shape = 'u8[262144]{0}', space=vmem, size = 0x40000, scoped, tag = 'input window, operand 4, single buffered']
    #allocation4 [shape = 's32[1]{0}', space=sflag, size = 0x4, scoped, tag = 'scoped memory for critic_forward.1']
    #allocation5 [shape = 's32[1]{0}', space=sflag, size = 0x4, scoped, tag = 'scoped memory for critic_forward.1']
    #allocation6 [shape = 'u8[262144]{0}', space=vmem, size = 0x40000, scoped, tag = 'input window, operand 6, single buffered']
    #allocation7 [shape = 's32[1]{0}', space=sflag, size = 0x4, scoped, tag = 'scoped memory for critic_forward.1']
    #allocation8 [shape = 'u8[2048]{0}', space=vmem, size = 0x800, scoped, tag = 'output window, operand 0, single buffered']
    %15 = vsyncpa [#allocation4], 0
    %16 = vsyncpa [#allocation7], 0
    %17 = vsyncpa [#allocation5], 0
    // Predicated region
    $region2: #{critic_forward.1} parent=1 // pred_check
      _
    $region3: #{critic_forward.1} parent=1 // pred_check_branch
      %19 = sbr.rel (0) target = $region5
    $region4: #{critic_forward.1} parent=1 // pred_region
      _
    $region5: #{critic_forward.1} parent=1 // pred_fallthru
      _
    // Predicated region
    $region6: #{critic_forward.1} parent=1 // pred_check
      _
    $region7: #{critic_forward.1} parent=1 // pred_check_branch
      %21 = sbr.rel (0) target = $region9
    $region8: #{critic_forward.1} parent=1 // pred_region
      _
    $region9: #{critic_forward.1} parent=1 // pred_fallthru
      _
    // Predicated region
    $region10: #{critic_forward.1} parent=1 // pred_check
      _
    $region11: #{critic_forward.1} parent=1 // pred_check_branch
      %23 = sbr.rel (0) target = $region13
    $region12: #{critic_forward.1} parent=1 // pred_region
      _
    $region13: #{critic_forward.1} parent=1 // pred_fallthru
      _
    // Predicated region
    $region14: #{critic_forward.1} parent=1 // pred_check
      _
    $region15: #{critic_forward.1} parent=1 // pred_check_branch
      %25 = sbr.rel (0) target = $region17
    $region16: #{critic_forward.1} parent=1 // pred_region
      _
    $region17: #{critic_forward.1} parent=1 // pred_fallthru
      _
    // Predicated region
    $region18: #{critic_forward.1} parent=1 // pred_check
      _
    $region19: #{critic_forward.1} parent=1 // pred_check_branch
      %27 = sbr.rel (0) target = $region21
    $region20: #{critic_forward.1} parent=1 // pred_region
      %s29 = ssub.s32 8192, 8192
      %30 = vsyncadd [#allocation4], %s29
      %s31 = sshll.u32 [#allocation3], 4
      %s32 = int_to_ptr.vmem [resolvable:$true] %s31
      %37 = dma.hbm_to_vmem [thread:$0]  %s4, 8192, %s32, [#allocation4], 256, 256, 16
    $region21: #{critic_forward.1} parent=1 // pred_fallthru
      _
    // Predicated region
    $region22: #{critic_forward.1} parent=1 // pred_check
      _
    $region23: #{critic_forward.1} parent=1 // pred_check_branch
      %39 = sbr.rel (0) target = $region25
    $region24: #{critic_forward.1} parent=1 // pred_region
      _
    $region25: #{critic_forward.1} parent=1 // pred_fallthru
      _
    // Predicated region
    $region26: #{critic_forward.1} parent=1 // pred_check
      _
    $region27: #{critic_forward.1} parent=1 // pred_check_branch
      %41 = sbr.rel (0) target = $region29
    $region28: #{critic_forward.1} parent=1 // pred_region
      %s43 = ssub.s32 8192, 8192
      %44 = vsyncadd [#allocation7], %s43
      %s45 = sshll.u32 [#allocation6], 4
      %s46 = int_to_ptr.vmem [resolvable:$true] %s45
      %51 = dma.hbm_to_vmem [thread:$0]  %s6, 8192, %s46, [#allocation7], 256, 256, 16
    $region29: #{critic_forward.1} parent=1 // pred_fallthru
      _
    // Predicated region
    $region30: #{critic_forward.1} parent=1 // pred_check
      _
    $region31: #{critic_forward.1} parent=1 // pred_check_branch
      %53 = sbr.rel (0) target = $region33
    $region32: #{critic_forward.1} parent=1 // pred_region
      _
    $region33: #{critic_forward.1} parent=1 // pred_fallthru
      _
    // Predicated region
    $region34: #{critic_forward.1} parent=1 // pred_check
      _
    $region35: #{critic_forward.1} parent=1 // pred_check_branch
      %55 = sbr.rel (0) target = $region37
    $region36: #{critic_forward.1} parent=1 // pred_region
      _
    $region37: #{critic_forward.1} parent=1 // pred_fallthru
      _
    // Predicated region
    $region38: #{critic_forward.1} parent=1 // pred_check
      _
    $region39: #{critic_forward.1} parent=1 // pred_check_branch
      %57 = sbr.rel (0) target = $region41
    $region40: #{critic_forward.1} parent=1 // pred_region
      _
    $region41: #{critic_forward.1} parent=1 // pred_fallthru
      _
    // Predicated region
    $region42: #{critic_forward.1} parent=1 // pred_check
      _
    $region43: #{critic_forward.1} parent=1 // pred_check_branch
      %59 = sbr.rel (0) target = $region45
    $region44: #{critic_forward.1} parent=1 // pred_region
      %60 = dma.done [#allocation4], 8192
    $region45: #{critic_forward.1} parent=1 // pred_fallthru
      _
    // Predicated region
    $region46: #{critic_forward.1} parent=1 // pred_check
      _
    $region47: #{critic_forward.1} parent=1 // pred_check_branch
      %62 = sbr.rel (0) target = $region49
    $region48: #{critic_forward.1} parent=1 // pred_region
      %63 = dma.done [#allocation7], 8192
    $region49: #{critic_forward.1} parent=1 // pred_fallthru
      _
    %v64 = vld [vmem:[%s0] sm:$0xf]
    %v65 = vld [vmem:[%s2] sm:$0xff]
    %v66 = vld [vmem:[%s2 + $0x8] sm:$0xff]
    %v67 = vld [vmem:[%s2 + $0x10] sm:$0xff]
    %v68 = vld [vmem:[%s2 + $0x18] sm:$0xff]
    %v69 = vld [vmem:[%s2 + $0x20] sm:$0xff]
    %v70 = vld [vmem:[%s2 + $0x28] sm:$0xff]
    %v71 = vld [vmem:[%s2 + $0x30] sm:$0xff]
    %v72 = vld [vmem:[%s2 + $0x38] sm:$0xff]
    %v73 = vld [vmem:[%s2 + $0x40] sm:$0xff]
    %v74 = vld [vmem:[%s2 + $0x48] sm:$0xff]
    %v75 = vld [vmem:[%s2 + $0x50] sm:$0xff]
    %v76 = vld [vmem:[%s2 + $0x58] sm:$0xff]
    %v77 = vld [vmem:[%s2 + $0x60] sm:$0xff]
    %v78 = vld [vmem:[%s2 + $0x68] sm:$0xff]
    %v79 = vld [vmem:[%s2 + $0x70] sm:$0xff]
    %v80 = vld [vmem:[%s2 + $0x78] sm:$0xff]
    %v81 = vld [vmem:[%s3] sm:$0x1]
    %v83 = vlaneseq
    %v84 = vshrl.u32 %v83, 7
    %v85 = vsub.s32 0, %v84
    %v86 = vrot.slane %v81, %v85
    %88 = vmatprep.subr.mxu0 0.0
    %89 = vmatpush1.msra.mxu0 %v80
    %90 = vmatprep.subr.mxu0 0.0
    %91 = vmatpush1.msra.mxu0 %v79
    %92 = vmatprep.subr.mxu0 0.0
    %93 = vmatpush1.msra.mxu0 %v78
    %94 = vmatprep.subr.mxu0 0.0
    %95 = vmatpush1.msra.mxu0 %v77
    %96 = vmatprep.subr.mxu0 0.0
    %97 = vmatpush1.msra.mxu0 %v76
    %98 = vmatprep.subr.mxu0 0.0
    %99 = vmatpush1.msra.mxu0 %v75
    %100 = vmatprep.subr.mxu0 0.0
    %101 = vmatpush1.msra.mxu0 %v74
    %102 = vmatprep.subr.mxu0 0.0
    %103 = vmatpush1.msra.mxu0 %v73
    %104 = vmatprep.subr.mxu0 0.0
    %105 = vmatpush1.msra.mxu0 %v72
    %106 = vmatprep.subr.mxu0 0.0
    %107 = vmatpush1.msra.mxu0 %v71
    %108 = vmatprep.subr.mxu0 0.0
    %109 = vmatpush1.msra.mxu0 %v70
    %110 = vmatprep.subr.mxu0 0.0
    %111 = vmatpush1.msra.mxu0 %v69
    %112 = vmatprep.subr.mxu0 0.0
    %113 = vmatpush1.msra.mxu0 %v68
    %114 = vmatprep.subr.mxu0 0.0
    %115 = vmatpush1.msra.mxu0 %v67
    %116 = vmatprep.subr.mxu0 0.0
    %117 = vmatpush1.msra.mxu0 %v66
    %118 = vmatprep.subr.mxu0 0.0
    %119 = vmatpush1.msra.mxu0 %v65
    %120 = vmatprep.subr.mxu0 0.0
    %121 = vmatpush2.msra.mxu0 0.0
    %122 = vmatprep.subr.mxu0 0.0
    %123 = vmatpush2.msra.mxu0 0.0
    %124 = vmatprep.subr.mxu0 0.0
    %125 = vmatpush2.msra.mxu0 0.0
    %126 = vmatprep.subr.mxu0 0.0
    %127 = vmatpush2.msra.mxu0 0.0
    %128 = vmatprep.subr.mxu0 0.0
    %129 = vmatpush2.msra.mxu0 0.0
    %130 = vmatprep.subr.mxu0 0.0
    %131 = vmatpush2.msra.mxu0 0.0
    %132 = vmatprep.subr.mxu0 0.0
    %133 = vmatpush2.msra.mxu0 0.0
    %134 = vmatprep.subr.mxu0 0.0
    %135 = vmatpush2.msra.mxu0 0.0
    %136 = vmatprep.subr.mxu0 0.0
    %137 = vmatpush2.msra.mxu0 0.0
    %138 = vmatprep.subr.mxu0 0.0
    %139 = vmatpush2.msra.mxu0 0.0
    %140 = vmatprep.subr.mxu0 0.0
    %141 = vmatpush2.msra.mxu0 0.0
    %142 = vmatprep.subr.mxu0 0.0
    %143 = vmatpush2.msra.mxu0 0.0
    %144 = vmatprep.subr.mxu0 0.0
    %145 = vmatpush2.msra.mxu0 0.0
    %146 = vmatprep.subr.mxu0 0.0
    %147 = vmatpush2.msra.mxu0 0.0
    %148 = vmatprep.subr.mxu0 0.0
    %149 = vmatpush2.msra.mxu0 0.0
    %150 = vmatprep.subr.mxu0 0.0
    %151 = vmatpush2.msra.mxu0 0.0
    %152 = vmatprep.mubr.f32.mxu0 0.0
    %153 = vmatmul.mubr.f32.gmra.mxu0 %v64
    %v154 = vpop.f32.mrf.mxu0
    %v155 = vadd.f32 %v86, %v154
    %v156 = vpop.f32.mrf.mxu0
    %157 = vdwg.mxu0
    %v158 = vmax.f32 %v155, 0.0
    %159 = vst [vmem:[#allocation2] sm:$0xf] %v158
    %160 = vst [vmem:[#allocation2 + $0x4] sm:$0xf] 0.0
    %v161 = vld [vmem:[%s1] sm:$0xf]
    %vm162 = vcmask 158720
    %163 = vst.msk [vmem:[#allocation2 + $0x4] sm:$0xf] %vm162, %v161
    %v164 = vld [vmem:[#allocation2] sm:$0xff]
    %v165 = vld [vmem:[#allocation3] sm:$0xff]
    %v166 = vld [vmem:[#allocation3 + $0x8] sm:$0xff]
    %v167 = vld [vmem:[#allocation3 + $0x10] sm:$0xff]
    %v168 = vld [vmem:[#allocation3 + $0x18] sm:$0xff]
    %v169 = vld [vmem:[#allocation3 + $0x20] sm:$0xff]
    %v170 = vld [vmem:[#allocation3 + $0x28] sm:$0xff]
    %v171 = vld [vmem:[#allocation3 + $0x30] sm:$0xff]
    %v172 = vld [vmem:[#allocation3 + $0x38] sm:$0xff]
    %v173 = vld [vmem:[#allocation3 + $0x40] sm:$0xff]
    %v174 = vld [vmem:[#allocation3 + $0x48] sm:$0xff]
    %v175 = vld [vmem:[#allocation3 + $0x50] sm:$0xff]
    %v176 = vld [vmem:[#allocation3 + $0x58] sm:$0xff]
    %v177 = vld [vmem:[#allocation3 + $0x60] sm:$0xff]
    %v178 = vld [vmem:[#allocation3 + $0x68] sm:$0xff]
    %v179 = vld [vmem:[#allocation3 + $0x70] sm:$0xff]
    %v180 = vld [vmem:[#allocation3 + $0x78] sm:$0xff]
    %v181 = vld [vmem:[#allocation3 + $0x80] sm:$0xff]
    %v182 = vld [vmem:[#allocation3 + $0x88] sm:$0xff]
    %v183 = vld [vmem:[#allocation3 + $0x90] sm:$0xff]
    %v184 = vld [vmem:[#allocation3 + $0x98] sm:$0xff]
    %v185 = vld [vmem:[#allocation3 + $0xa0] sm:$0xff]
    %v186 = vld [vmem:[#allocation3 + $0xa8] sm:$0xff]
    %v187 = vld [vmem:[#allocation3 + $0xb0] sm:$0xff]
    %v188 = vld [vmem:[#allocation3 + $0xb8] sm:$0xff]
    %v189 = vld [vmem:[#allocation3 + $0xc0] sm:$0xff]
    %v190 = vld [vmem:[#allocation3 + $0xc8] sm:$0xff]
    %v191 = vld [vmem:[#allocation3 + $0xd0] sm:$0xff]
    %v192 = vld [vmem:[#allocation3 + $0xd8] sm:$0xff]
    %v193 = vld [vmem:[#allocation3 + $0xe0] sm:$0xff]
    %v194 = vld [vmem:[#allocation3 + $0xe8] sm:$0xff]
    %v195 = vld [vmem:[#allocation3 + $0xf0] sm:$0xff]
    %v196 = vld [vmem:[#allocation3 + $0xf8] sm:$0xff]
    %v197 = vld [vmem:[#allocation3 + $0x100] sm:$0xff]
    %v198 = vld [vmem:[#allocation3 + $0x108] sm:$0xff]
    %v199 = vld [vmem:[#allocation3 + $0x110] sm:$0xff]
    %v200 = vld [vmem:[#allocation3 + $0x118] sm:$0xff]
    %v201 = vld [vmem:[#allocation3 + $0x120] sm:$0xff]
    %v202 = vld [vmem:[#allocation3 + $0x128] sm:$0xff]
    %v203 = vld [vmem:[#allocation3 + $0x130] sm:$0xff]
    %v204 = vld [vmem:[#allocation3 + $0x138] sm:$0xff]
    %v205 = vld [vmem:[#allocation3 + $0x140] sm:$0xff]
    %v206 = vld [vmem:[#allocation3 + $0x148] sm:$0xff]
    %v207 = vld [vmem:[#allocation3 + $0x150] sm:$0xff]
    %v208 = vld [vmem:[#allocation3 + $0x158] sm:$0xff]
    %v209 = vld [vmem:[#allocation3 + $0x160] sm:$0xff]
    %v210 = vld [vmem:[#allocation3 + $0x168] sm:$0xff]
    %v211 = vld [vmem:[#allocation3 + $0x170] sm:$0xff]
    %v212 = vld [vmem:[#allocation3 + $0x178] sm:$0xff]
    %v213 = vld [vmem:[#allocation3 + $0x180] sm:$0xff]
    %v214 = vld [vmem:[#allocation3 + $0x188] sm:$0xff]
    %v215 = vld [vmem:[#allocation3 + $0x190] sm:$0xff]
    %v216 = vld [vmem:[#allocation3 + $0x198] sm:$0xff]
    %v217 = vld [vmem:[#allocation3 + $0x1a0] sm:$0xff]
    %v218 = vld [vmem:[#allocation3 + $0x1a8] sm:$0xff]
    %v219 = vld [vmem:[#allocation3 + $0x1b0] sm:$0xff]
    %v220 = vld [vmem:[#allocation3 + $0x1b8] sm:$0xff]
    %v221 = vld [vmem:[#allocation3 + $0x1c0] sm:$0xff]
    %v222 = vld [vmem:[#allocation3 + $0x1c8] sm:$0xff]
    %v223 = vld [vmem:[#allocation3 + $0x1d0] sm:$0xff]
    %v224 = vld [vmem:[#allocation3 + $0x1d8] sm:$0xff]
    %v225 = vld [vmem:[#allocation3 + $0x1e0] sm:$0xff]
    %v226 = vld [vmem:[#allocation3 + $0x1e8] sm:$0xff]
    %v227 = vld [vmem:[#allocation3 + $0x1f0] sm:$0xff]
    %v228 = vld [vmem:[#allocation3 + $0x1f8] sm:$0xff]
    %v229 = vld [vmem:[%s5] sm:$0x3]
    %v231 = vlaneseq
    %v232 = vshrl.u32 %v231, 7
    %v233 = vsub.s32 0, %v232
    %v234 = vrot.slane %v229, %v233
    %v235 = vlaneseq
    %v236 = vshrl.u32 %v235, 7
    %v237 = vsub.s32 1, %v236
    %v238 = vrot.slane %v229, %v237
    %v242 = vcombine.high %v164, %v164
    %244 = vmatprep.subr.mxu0 %v196
    %245 = vmatpush1.msra.mxu0 %v195
    %246 = vmatprep.subr.mxu0 %v194
    %247 = vmatpush1.msra.mxu0 %v193
    %248 = vmatprep.subr.mxu0 %v192
    %249 = vmatpush1.msra.mxu0 %v191
    %250 = vmatprep.subr.mxu0 %v190
    %251 = vmatpush1.msra.mxu0 %v189
    %252 = vmatprep.subr.mxu0 %v188
    %253 = vmatpush1.msra.mxu0 %v187
    %254 = vmatprep.subr.mxu0 %v186
    %255 = vmatpush1.msra.mxu0 %v185
    %256 = vmatprep.subr.mxu0 %v184
    %257 = vmatpush1.msra.mxu0 %v183
    %258 = vmatprep.subr.mxu0 %v182
    %259 = vmatpush1.msra.mxu0 %v181
    %260 = vmatprep.subr.mxu0 %v180
    %261 = vmatpush1.msra.mxu0 %v179
    %262 = vmatprep.subr.mxu0 %v178
    %263 = vmatpush1.msra.mxu0 %v177
    %264 = vmatprep.subr.mxu0 %v176
    %265 = vmatpush1.msra.mxu0 %v175
    %266 = vmatprep.subr.mxu0 %v174
    %267 = vmatpush1.msra.mxu0 %v173
    %268 = vmatprep.subr.mxu0 %v172
    %269 = vmatpush1.msra.mxu0 %v171
    %270 = vmatprep.subr.mxu0 %v170
    %271 = vmatpush1.msra.mxu0 %v169
    %272 = vmatprep.subr.mxu0 %v168
    %273 = vmatpush1.msra.mxu0 %v167
    %274 = vmatprep.subr.mxu0 %v166
    %275 = vmatpush1.msra.mxu0 %v165
    %276 = vmatprep.subr.mxu0 %v228
    %277 = vmatpush2.msra.mxu0 %v227
    %278 = vmatprep.subr.mxu0 %v226
    %279 = vmatpush2.msra.mxu0 %v225
    %280 = vmatprep.subr.mxu0 %v224
    %281 = vmatpush2.msra.mxu0 %v223
    %282 = vmatprep.subr.mxu0 %v222
    %283 = vmatpush2.msra.mxu0 %v221
    %284 = vmatprep.subr.mxu0 %v220
    %285 = vmatpush2.msra.mxu0 %v219
    %286 = vmatprep.subr.mxu0 %v218
    %287 = vmatpush2.msra.mxu0 %v217
    %288 = vmatprep.subr.mxu0 %v216
    %289 = vmatpush2.msra.mxu0 %v215
    %290 = vmatprep.subr.mxu0 %v214
    %291 = vmatpush2.msra.mxu0 %v213
    %292 = vmatprep.subr.mxu0 %v212
    %293 = vmatpush2.msra.mxu0 %v211
    %294 = vmatprep.subr.mxu0 %v210
    %295 = vmatpush2.msra.mxu0 %v209
    %296 = vmatprep.subr.mxu0 %v208
    %297 = vmatpush2.msra.mxu0 %v207
    %298 = vmatprep.subr.mxu0 %v206
    %299 = vmatpush2.msra.mxu0 %v205
    %300 = vmatprep.subr.mxu0 %v204
    %301 = vmatpush2.msra.mxu0 %v203
    %302 = vmatprep.subr.mxu0 %v202
    %303 = vmatpush2.msra.mxu0 %v201
    %304 = vmatprep.subr.mxu0 %v200
    %305 = vmatpush2.msra.mxu0 %v199
    %306 = vmatprep.subr.mxu0 %v198
    %307 = vmatpush2.msra.mxu0 %v197
    %308 = vmatprep.mubr.f32.mxu0 %v242
    %309 = vmatmul.mubr.f32.gmra.mxu0 %v164
    %v310 = vpop.f32.mrf.mxu0
    %v311 = vadd.f32 %v234, %v310
    %v312 = vpop.f32.mrf.mxu0
    %v313 = vadd.f32 %v238, %v312
    %314 = vdwg.mxu0
    %v315 = vmax.f32 %v311, 0.0
    %v316 = vmax.f32 %v313, 0.0
    %v317 = vld [vmem:[#allocation6] sm:$0xff]
    %v318 = vld [vmem:[#allocation6 + $0x8] sm:$0xff]
    %v319 = vld [vmem:[#allocation6 + $0x10] sm:$0xff]
    %v320 = vld [vmem:[#allocation6 + $0x18] sm:$0xff]
    %v321 = vld [vmem:[#allocation6 + $0x20] sm:$0xff]
    %v322 = vld [vmem:[#allocation6 + $0x28] sm:$0xff]
    %v323 = vld [vmem:[#allocation6 + $0x30] sm:$0xff]
    %v324 = vld [vmem:[#allocation6 + $0x38] sm:$0xff]
    %v325 = vld [vmem:[#allocation6 + $0x40] sm:$0xff]
    %v326 = vld [vmem:[#allocation6 + $0x48] sm:$0xff]
    %v327 = vld [vmem:[#allocation6 + $0x50] sm:$0xff]
    %v328 = vld [vmem:[#allocation6 + $0x58] sm:$0xff]
    %v329 = vld [vmem:[#allocation6 + $0x60] sm:$0xff]
    %v330 = vld [vmem:[#allocation6 + $0x68] sm:$0xff]
    %v331 = vld [vmem:[#allocation6 + $0x70] sm:$0xff]
    %v332 = vld [vmem:[#allocation6 + $0x78] sm:$0xff]
    %v333 = vld [vmem:[#allocation6 + $0x80] sm:$0xff]
    %v334 = vld [vmem:[#allocation6 + $0x88] sm:$0xff]
    %v335 = vld [vmem:[#allocation6 + $0x90] sm:$0xff]
    %v336 = vld [vmem:[#allocation6 + $0x98] sm:$0xff]
    %v337 = vld [vmem:[#allocation6 + $0xa0] sm:$0xff]
    %v338 = vld [vmem:[#allocation6 + $0xa8] sm:$0xff]
    %v339 = vld [vmem:[#allocation6 + $0xb0] sm:$0xff]
    %v340 = vld [vmem:[#allocation6 + $0xb8] sm:$0xff]
    %v341 = vld [vmem:[#allocation6 + $0xc0] sm:$0xff]
    %v342 = vld [vmem:[#allocation6 + $0xc8] sm:$0xff]
    %v343 = vld [vmem:[#allocation6 + $0xd0] sm:$0xff]
    %v344 = vld [vmem:[#allocation6 + $0xd8] sm:$0xff]
    %v345 = vld [vmem:[#allocation6 + $0xe0] sm:$0xff]
    %v346 = vld [vmem:[#allocation6 + $0xe8] sm:$0xff]
    %v347 = vld [vmem:[#allocation6 + $0xf0] sm:$0xff]
    %v348 = vld [vmem:[#allocation6 + $0xf8] sm:$0xff]
    %v349 = vld [vmem:[#allocation6 + $0x100] sm:$0xff]
    %v350 = vld [vmem:[#allocation6 + $0x108] sm:$0xff]
    %v351 = vld [vmem:[#allocation6 + $0x110] sm:$0xff]
    %v352 = vld [vmem:[#allocation6 + $0x118] sm:$0xff]
    %v353 = vld [vmem:[#allocation6 + $0x120] sm:$0xff]
    %v354 = vld [vmem:[#allocation6 + $0x128] sm:$0xff]
    %v355 = vld [vmem:[#allocation6 + $0x130] sm:$0xff]
    %v356 = vld [vmem:[#allocation6 + $0x138] sm:$0xff]
    %v357 = vld [vmem:[#allocation6 + $0x140] sm:$0xff]
    %v358 = vld [vmem:[#allocation6 + $0x148] sm:$0xff]
    %v359 = vld [vmem:[#allocation6 + $0x150] sm:$0xff]
    %v360 = vld [vmem:[#allocation6 + $0x158] sm:$0xff]
    %v361 = vld [vmem:[#allocation6 + $0x160] sm:$0xff]
    %v362 = vld [vmem:[#allocation6 + $0x168] sm:$0xff]
    %v363 = vld [vmem:[#allocation6 + $0x170] sm:$0xff]
    %v364 = vld [vmem:[#allocation6 + $0x178] sm:$0xff]
    %v365 = vld [vmem:[#allocation6 + $0x180] sm:$0xff]
    %v366 = vld [vmem:[#allocation6 + $0x188] sm:$0xff]
    %v367 = vld [vmem:[#allocation6 + $0x190] sm:$0xff]
    %v368 = vld [vmem:[#allocation6 + $0x198] sm:$0xff]
    %v369 = vld [vmem:[#allocation6 + $0x1a0] sm:$0xff]
    %v370 = vld [vmem:[#allocation6 + $0x1a8] sm:$0xff]
    %v371 = vld [vmem:[#allocation6 + $0x1b0] sm:$0xff]
    %v372 = vld [vmem:[#allocation6 + $0x1b8] sm:$0xff]
    %v373 = vld [vmem:[#allocation6 + $0x1c0] sm:$0xff]
    %v374 = vld [vmem:[#allocation6 + $0x1c8] sm:$0xff]
    %v375 = vld [vmem:[#allocation6 + $0x1d0] sm:$0xff]
    %v376 = vld [vmem:[#allocation6 + $0x1d8] sm:$0xff]
    %v377 = vld [vmem:[#allocation6 + $0x1e0] sm:$0xff]
    %v378 = vld [vmem:[#allocation6 + $0x1e8] sm:$0xff]
    %v379 = vld [vmem:[#allocation6 + $0x1f0] sm:$0xff]
    %v380 = vld [vmem:[#allocation6 + $0x1f8] sm:$0xff]
    %v381 = vld [vmem:[%s7] sm:$0x3]
    %v383 = vlaneseq
    %v384 = vshrl.u32 %v383, 7
    %v385 = vsub.s32 0, %v384
    %v386 = vrot.slane %v381, %v385
    %v387 = vlaneseq
    %v388 = vshrl.u32 %v387, 7
    %v389 = vsub.s32 1, %v388
    %v390 = vrot.slane %v381, %v389
    %393 = vmatprep.subr.mxu0 %v348
    %394 = vmatpush1.msra.mxu0 %v347
    %395 = vmatprep.subr.mxu0 %v346
    %396 = vmatpush1.msra.mxu0 %v345
    %397 = vmatprep.subr.mxu0 %v344
    %398 = vmatpush1.msra.mxu0 %v343
    %399 = vmatprep.subr.mxu0 %v342
    %400 = vmatpush1.msra.mxu0 %v341
    %401 = vmatprep.subr.mxu0 %v340
    %402 = vmatpush1.msra.mxu0 %v339
    %403 = vmatprep.subr.mxu0 %v338
    %404 = vmatpush1.msra.mxu0 %v337
    %405 = vmatprep.subr.mxu0 %v336
    %406 = vmatpush1.msra.mxu0 %v335
    %407 = vmatprep.subr.mxu0 %v334
    %408 = vmatpush1.msra.mxu0 %v333
    %409 = vmatprep.subr.mxu0 %v332
    %410 = vmatpush1.msra.mxu0 %v331
    %411 = vmatprep.subr.mxu0 %v330
    %412 = vmatpush1.msra.mxu0 %v329
    %413 = vmatprep.subr.mxu0 %v328
    %414 = vmatpush1.msra.mxu0 %v327
    %415 = vmatprep.subr.mxu0 %v326
    %416 = vmatpush1.msra.mxu0 %v325
    %417 = vmatprep.subr.mxu0 %v324
    %418 = vmatpush1.msra.mxu0 %v323
    %419 = vmatprep.subr.mxu0 %v322
    %420 = vmatpush1.msra.mxu0 %v321
    %421 = vmatprep.subr.mxu0 %v320
    %422 = vmatpush1.msra.mxu0 %v319
    %423 = vmatprep.subr.mxu0 %v318
    %424 = vmatpush1.msra.mxu0 %v317
    %425 = vmatprep.subr.mxu0 %v380
    %426 = vmatpush2.msra.mxu0 %v379
    %427 = vmatprep.subr.mxu0 %v378
    %428 = vmatpush2.msra.mxu0 %v377
    %429 = vmatprep.subr.mxu0 %v376
    %430 = vmatpush2.msra.mxu0 %v375
    %431 = vmatprep.subr.mxu0 %v374
    %432 = vmatpush2.msra.mxu0 %v373
    %433 = vmatprep.subr.mxu0 %v372
    %434 = vmatpush2.msra.mxu0 %v371
    %435 = vmatprep.subr.mxu0 %v370
    %436 = vmatpush2.msra.mxu0 %v369
    %437 = vmatprep.subr.mxu0 %v368
    %438 = vmatpush2.msra.mxu0 %v367
    %439 = vmatprep.subr.mxu0 %v366
    %440 = vmatpush2.msra.mxu0 %v365
    %441 = vmatprep.subr.mxu0 %v364
    %442 = vmatpush2.msra.mxu0 %v363
    %443 = vmatprep.subr.mxu0 %v362
    %444 = vmatpush2.msra.mxu0 %v361
    %445 = vmatprep.subr.mxu0 %v360
    %446 = vmatpush2.msra.mxu0 %v359
    %447 = vmatprep.subr.mxu0 %v358
    %448 = vmatpush2.msra.mxu0 %v357
    %449 = vmatprep.subr.mxu0 %v356
    %450 = vmatpush2.msra.mxu0 %v355
    %451 = vmatprep.subr.mxu0 %v354
    %452 = vmatpush2.msra.mxu0 %v353
    %453 = vmatprep.subr.mxu0 %v352
    %454 = vmatpush2.msra.mxu0 %v351
    %455 = vmatprep.subr.mxu0 %v350
    %456 = vmatpush2.msra.mxu0 %v349
    %457 = vmatprep.mubr.f32.mxu0 %v316
    %458 = vmatmul.mubr.f32.gmra.mxu0 %v315
    %v459 = vpop.f32.mrf.mxu0
    %v460 = vadd.f32 %v386, %v459
    %v461 = vpop.f32.mrf.mxu0
    %v462 = vadd.f32 %v390, %v461
    %463 = vdwg.mxu0
    %v464 = vmax.f32 %v460, 0.0
    %v465 = vmax.f32 %v462, 0.0
    %v466 = vld [vmem:[%s8] sm:$0xff]
    %v467 = vld [vmem:[%s8 + $0x8] sm:$0xff]
    %v468 = vld [vmem:[%s8 + $0x10] sm:$0xff]
    %v469 = vld [vmem:[%s8 + $0x18] sm:$0xff]
    %v470 = vld [vmem:[%s8 + $0x20] sm:$0xff]
    %v471 = vld [vmem:[%s8 + $0x28] sm:$0xff]
    %v472 = vld [vmem:[%s8 + $0x30] sm:$0xff]
    %v473 = vld [vmem:[%s8 + $0x38] sm:$0xff]
    %v474 = vld [vmem:[%s8 + $0x40] sm:$0xff]
    %v475 = vld [vmem:[%s8 + $0x48] sm:$0xff]
    %v476 = vld [vmem:[%s8 + $0x50] sm:$0xff]
    %v477 = vld [vmem:[%s8 + $0x58] sm:$0xff]
    %v478 = vld [vmem:[%s8 + $0x60] sm:$0xff]
    %v479 = vld [vmem:[%s8 + $0x68] sm:$0xff]
    %v480 = vld [vmem:[%s8 + $0x70] sm:$0xff]
    %v481 = vld [vmem:[%s8 + $0x78] sm:$0xff]
    %v482 = vld [vmem:[%s8 + $0x80] sm:$0xff]
    %v483 = vld [vmem:[%s8 + $0x88] sm:$0xff]
    %v484 = vld [vmem:[%s8 + $0x90] sm:$0xff]
    %v485 = vld [vmem:[%s8 + $0x98] sm:$0xff]
    %v486 = vld [vmem:[%s8 + $0xa0] sm:$0xff]
    %v487 = vld [vmem:[%s8 + $0xa8] sm:$0xff]
    %v488 = vld [vmem:[%s8 + $0xb0] sm:$0xff]
    %v489 = vld [vmem:[%s8 + $0xb8] sm:$0xff]
    %v490 = vld [vmem:[%s8 + $0xc0] sm:$0xff]
    %v491 = vld [vmem:[%s8 + $0xc8] sm:$0xff]
    %v492 = vld [vmem:[%s8 + $0xd0] sm:$0xff]
    %v493 = vld [vmem:[%s8 + $0xd8] sm:$0xff]
    %v494 = vld [vmem:[%s8 + $0xe0] sm:$0xff]
    %v495 = vld [vmem:[%s8 + $0xe8] sm:$0xff]
    %v496 = vld [vmem:[%s8 + $0xf0] sm:$0xff]
    %v497 = vld [vmem:[%s8 + $0xf8] sm:$0xff]
    %v498 = vld [vmem:[%s9] sm:$0x1]
    %v500 = vlaneseq
    %v501 = vshrl.u32 %v500, 7
    %v502 = vsub.s32 0, %v501
    %v503 = vrot.slane %v498, %v502
    %505 = vmatprep.subr.mxu0 0.0
    %506 = vmatpush1.msra.mxu0 %v481
    %507 = vmatprep.subr.mxu0 0.0
    %508 = vmatpush1.msra.mxu0 %v480
    %509 = vmatprep.subr.mxu0 0.0
    %510 = vmatpush1.msra.mxu0 %v479
    %511 = vmatprep.subr.mxu0 0.0
    %512 = vmatpush1.msra.mxu0 %v478
    %513 = vmatprep.subr.mxu0 0.0
    %514 = vmatpush1.msra.mxu0 %v477
    %515 = vmatprep.subr.mxu0 0.0
    %516 = vmatpush1.msra.mxu0 %v476
    %517 = vmatprep.subr.mxu0 0.0
    %518 = vmatpush1.msra.mxu0 %v475
    %519 = vmatprep.subr.mxu0 0.0
    %520 = vmatpush1.msra.mxu0 %v474
    %521 = vmatprep.subr.mxu0 0.0
    %522 = vmatpush1.msra.mxu0 %v473
    %523 = vmatprep.subr.mxu0 0.0
    %524 = vmatpush1.msra.mxu0 %v472
    %525 = vmatprep.subr.mxu0 0.0
    %526 = vmatpush1.msra.mxu0 %v471
    %527 = vmatprep.subr.mxu0 0.0
    %528 = vmatpush1.msra.mxu0 %v470
    %529 = vmatprep.subr.mxu0 0.0
    %530 = vmatpush1.msra.mxu0 %v469
    %531 = vmatprep.subr.mxu0 0.0
    %532 = vmatpush1.msra.mxu0 %v468
    %533 = vmatprep.subr.mxu0 0.0
    %534 = vmatpush1.msra.mxu0 %v467
    %535 = vmatprep.subr.mxu0 0.0
    %536 = vmatpush1.msra.mxu0 %v466
    %537 = vmatprep.subr.mxu0 0.0
    %538 = vmatpush2.msra.mxu0 %v497
    %539 = vmatprep.subr.mxu0 0.0
    %540 = vmatpush2.msra.mxu0 %v496
    %541 = vmatprep.subr.mxu0 0.0
    %542 = vmatpush2.msra.mxu0 %v495
    %543 = vmatprep.subr.mxu0 0.0
    %544 = vmatpush2.msra.mxu0 %v494
    %545 = vmatprep.subr.mxu0 0.0
    %546 = vmatpush2.msra.mxu0 %v493
    %547 = vmatprep.subr.mxu0 0.0
    %548 = vmatpush2.msra.mxu0 %v492
    %549 = vmatprep.subr.mxu0 0.0
    %550 = vmatpush2.msra.mxu0 %v491
    %551 = vmatprep.subr.mxu0 0.0
    %552 = vmatpush2.msra.mxu0 %v490
    %553 = vmatprep.subr.mxu0 0.0
    %554 = vmatpush2.msra.mxu0 %v489
    %555 = vmatprep.subr.mxu0 0.0
    %556 = vmatpush2.msra.mxu0 %v488
    %557 = vmatprep.subr.mxu0 0.0
    %558 = vmatpush2.msra.mxu0 %v487
    %559 = vmatprep.subr.mxu0 0.0
    %560 = vmatpush2.msra.mxu0 %v486
    %561 = vmatprep.subr.mxu0 0.0
    %562 = vmatpush2.msra.mxu0 %v485
    %563 = vmatprep.subr.mxu0 0.0
    %564 = vmatpush2.msra.mxu0 %v484
    %565 = vmatprep.subr.mxu0 0.0
    %566 = vmatpush2.msra.mxu0 %v483
    %567 = vmatprep.subr.mxu0 0.0
    %568 = vmatpush2.msra.mxu0 %v482
    %569 = vmatprep.mubr.f32.mxu0 %v465
    %570 = vmatmul.mubr.f32.gmra.mxu0 %v464
    %v571 = vpop.f32.mrf.mxu0
    %v572 = vadd.f32 %v503, %v571
    %v573 = vpop.f32.mrf.mxu0
    %574 = vdwg.mxu0
    %vm575 = vcmask 142336
    %576 = vst.msk [vmem:[#allocation8] sm:$0xf] %vm575, %v572
    // Predicated region
    $region50: #{critic_forward.1} parent=1 // pred_check
      _
    $region51: #{critic_forward.1} parent=1 // pred_check_branch
      %578 = sbr.rel (0) target = $region53
    $region52: #{critic_forward.1} parent=1 // pred_region
      %s580 = ssub.s32 64, 64
      %581 = vsyncadd [#allocation5], %s580
      %s583 = sshll.u32 [#allocation8], 4
      %s584 = int_to_ptr.vmem [resolvable:$true] %s583
      %586 = dma.vmem_to_hbm [thread:$0]  %s584, 64, %s10, [#allocation5]
    $region53: #{critic_forward.1} parent=1 // pred_fallthru
      _
    // Predicated region
    $region54: #{critic_forward.1} parent=1 // pred_check
      _
    $region55: #{critic_forward.1} parent=1 // pred_check_branch
      %588 = sbr.rel (0) target = $region57
    $region56: #{critic_forward.1} parent=1 // pred_region
      %589 = dma.done [#allocation5], 64
    $region57: #{critic_forward.1} parent=1 // pred_fallthru
      _
    %590 = vsyncpa [#allocation4], 1
    %591 = vsyncpa [#allocation7], 1
    %592 = vsyncpa [#allocation5], 1

</llo_original>
